<compile_context>
chip_gen: v7x
topology: tpu7x:2x2x1
jax: 0.10.0
libtpu: 0.0.40
codegen_flags: <defaults>
</compile_context>

<pallas_src>
import math

import jax
import jax.numpy as jnp
from jax.experimental import pallas as pl
from jax.experimental.pallas import tpu as pltpu


_SQRT_2_OVER_PI = 0.7978845608028654  # sqrt(2 / pi)


def _round_up(x, m):
    return ((x + m - 1) // m) * m


def _cdiv(a, b):
    return -(-a // b)


def _gelu_tanh_f32(h):
    # torch.nn.GELU(approximate='tanh'):
    #   0.5 * h * (1 + tanh(sqrt(2/pi) * (h + 0.044715 * h^3)))
    return 0.5 * h * (1.0 + jnp.tanh(_SQRT_2_OVER_PI * (h + 0.044715 * h * h * h)))


# ---------------------------------------------------------------------------
# Kernel
# ---------------------------------------------------------------------------
def mlp_block_kernel(x_ref, w1_ref, b1_ref, w2_ref, b2_ref, o_ref, acc_ref):
    """One (row_tile x hid_tile) step of Linear -> tanh-GELU -> Linear.

    Grid = (row tiles ["parallel"], hidden tiles ["arbitrary" reduction]).
    The second matmul accumulates into an f32 VMEM scratch across the hidden
    axis; bias-2 is added and the tile written back on the last hidden step.
    """
    k = pl.program_id(1)

    # First Linear slice: (rt, in_p) @ (in_p, ht) on the MXU, f32 accumulation.
    h = jnp.dot(x_ref[...], w1_ref[...], preferred_element_type=jnp.float32)
    h = h + b1_ref[...].astype(jnp.float32)

    # tanh-GELU in f32 (tanh rides the EUP slot, the polynomial rides the VPU).
    h = _gelu_tanh_f32(h)

    # Second Linear slice: cast back to the MXU operand dtype (bf16 on the
    # fast path) and accumulate in the resident f32 scratch.
    contrib = jnp.dot(h.astype(w2_ref.dtype), w2_ref[...],
                      preferred_element_type=jnp.float32)

    # First k step stores directly (no zero-fill + add filler work).
    @pl.when(k == 0)
    def _():
        acc_ref[...] = contrib

    @pl.when(k > 0)
    def _():
        acc_ref[...] += contrib

    @pl.when(k == pl.num_programs(1) - 1)
    def _():
        o_ref[...] = (acc_ref[...] + b2_ref[...].astype(jnp.float32)).astype(o_ref.dtype)


# ---------------------------------------------------------------------------
# Chip-aware tile selection
# ---------------------------------------------------------------------------
def _chip_params():
    kind = ""
    try:
        kind = jax.devices()[0].device_kind.lower()
    except Exception:
        pass
    if "v5 lite" in kind or "v5e" in kind or "v5lite" in kind:
        # Single TC, 197 TF/s, ~0.82 TB/s -> crossover ~240 rows; 128 MiB VMEM.
        return dict(row_target=512, hid_tile=1024, vmem_budget=100 << 20, two_tc=False)
    if "v6" in kind:
        # Single TC, 918 TF/s, ~1.3 TB/s -> crossover ~714 rows; 128 MiB VMEM.
        return dict(row_target=1024, hid_tile=1024, vmem_budget=104 << 20, two_tc=False)
    if "v7" in kind:
        # 2 TCs/chip, 996 TF/s/TC, ~3.2 TB/s -> crossover ~320 rows; 64 MiB VMEM/TC.
        return dict(row_target=512, hid_tile=512, vmem_budget=52 << 20, two_tc=True)
    # Unknown / older chips: conservative budget valid on every generation.
    return dict(row_target=512, hid_tile=512, vmem_budget=48 << 20, two_tc=False)


def _choose_hidden_tiling(hid_p, ht_cap):
    """Pick ht (multiple of 128, <= cap) minimizing K padding, then steps."""
    ht_cap = max(128, _round_up(ht_cap, 128))
    best = None  # (waste, num_k, ht)
    for nk in range(1, hid_p // 128 + 1):
        ht = _round_up(_cdiv(hid_p, nk), 128)
        if ht > ht_cap:
            continue
        cand = (nk * ht - hid_p, nk, ht)
        if best is None or cand[:2] < best[:2]:
            best = cand
    if best is None:  # defensive; cannot happen since ht=128 always qualifies
        return 128, hid_p // 128
    return best[2], best[1]


def _fit_tiles(rows, in_p, hid_p, out_p, sub, isz, osz, chip):
    """Choose (rt, ht, num_k) under the chip VMEM budget, biased to big rt."""
    budget = chip["vmem_budget"]

    rt_desired = min(chip["row_target"], _round_up(rows, sub))
    if chip["two_tc"] and rows > sub:
        # Keep >=2 row steps so both v7x TensorCores get work ("parallel" axis).
        rt_desired = min(rt_desired, _round_up(_cdiv(rows, 2), sub))
    rt_desired = max(sub, _round_up(rt_desired, sub))

    caps = []
    for c in (chip["hid_tile"], 512, 256, 128):
        c = max(128, _round_up(min(c, hid_p), 128))
        if c not in caps:
            caps.append(c)
    caps.sort(reverse=True)

    best = None  # (rt, ht, num_k)
    for cap in caps:
        ht, num_k = _choose_hidden_tiling(hid_p, cap)
        w_buf = 1 if num_k == 1 else 2  # single-buffered resident weights when num_k == 1
        fixed = w_buf * (in_p * ht + ht * out_p) * isz + 2 * (ht + out_p) * 4
        per_row = (2 * in_p * isz        # x tile (double buffered)
                   + 2 * out_p * osz     # output tile (double buffered)
                   + out_p * 4           # f32 accumulator scratch
                   + 2 * ht * 4)         # f32 GELU intermediate headroom
        if budget <= fixed:
            continue
        rt_max = ((budget - fixed) // per_row // sub) * sub
        if rt_max < sub:
            continue
        rt = int(min(rt_desired, rt_max))
        if best is None or (rt, ht) > (best[0], best[1]):
            best = (rt, ht, num_k)
        if rt == rt_desired:
            break  # caps descend: first cap that allows full rt keeps the biggest ht
    if best is None:
        # TODO(synk): very wide in_dim (>= ~8K) should get its own reduction
        # grid axis (tile in_p, GELU after that reduction) instead of this
        # minimal-row-tile fallback.
        ht, num_k = _choose_hidden_tiling(hid_p, 128)
        best = (sub, ht, num_k)
    return best


# ---------------------------------------------------------------------------
# Wrapper
# ---------------------------------------------------------------------------
def mlp_block(x, w1, b1, w2, b2, *, compute_dtype=jnp.bfloat16, out_dtype=None,
              row_tile=None, hid_tile=None):
    """Fused MLP block: y = GELU_tanh(x @ w1 + b1) @ w2 + b2.

    x : [rows, in_dim]
    w1: [in_dim, hidden]   (pre-transposed vs. PyTorch's [hidden, in_dim])
    b1: [hidden] or [1, hidden]
    w2: [hidden, out_dim]
    b2: [out_dim] or [1, out_dim]
    """
    rows, in_dim = x.shape
    hidden = w1.shape[1]
    out_dim = w2.shape[1]
    out_dtype = x.dtype if out_dtype is None else out_dtype

    chip = _chip_params()
    if row_tile is not None:
        chip = dict(chip, row_target=int(row_tile))
    if hid_tile is not None:
        chip = dict(chip, hid_tile=int(hid_tile))

    isz = jnp.dtype(compute_dtype).itemsize
    osz = jnp.dtype(out_dtype).itemsize
    sub = {4: 8, 2: 16, 1: 32}.get(isz, 8)      # sublane multiple per dtype

    # Lane-dense padding of feature dims to multiples of 128 (exact: padded
    # hidden columns hit zero rows of w2, padded output columns are sliced off).
    in_p = _round_up(in_dim, 128)
    hid_p = _round_up(hidden, 128)
    out_p = _round_up(out_dim, 128)

    rt, ht, num_k = _fit_tiles(rows, in_p, hid_p, out_p, sub, isz, osz, chip)
    hid_pt = num_k * ht                         # K extent seen by the kernel
    rows_p = _round_up(rows, rt)
    num_i = rows_p // rt

    def _prep(a, target_shape, dtype):
        """Cast / zero-pad only if needed (no-op for pre-padded inputs)."""
        a = jnp.asarray(a)
        if a.dtype != dtype:
            a = a.astype(dtype)
        pad = [(0, t - s) for s, t in zip(a.shape, target_shape)]
        if any(p for _, p in pad):
            a = jnp.pad(a, pad)
        return a

    x_p = _prep(x, (rows_p, in_p), compute_dtype)
    w1_p = _prep(w1, (in_p, hid_pt), compute_dtype)
    w2_p = _prep(w2, (hid_pt, out_p), compute_dtype)
    b1_p = _prep(jnp.reshape(b1, (1, -1)), (1, hid_pt), jnp.float32)
    b2_p = _prep(jnp.reshape(b2, (1, -1)), (1, out_p), jnp.float32)

    vmem_limit = int(chip["vmem_budget"])

    cost = pl.CostEstimate(
        flops=int(2 * rows_p * (in_p * hid_pt + hid_pt * out_p)),
        transcendentals=int(rows_p * hid_pt),          # one tanh per hidden unit
        bytes_accessed=int(x_p.size * isz + w1_p.size * isz + w2_p.size * isz
                           + (b1_p.size + b2_p.size) * 4
                           + rows_p * out_p * osz),
    )

    def _call(single_buffer_weights):
        if single_buffer_weights:
            # num_k == 1: weight block indices are constant -> one buffer is
            # enough, halving their VMEM footprint (frees rt headroom on v7x).
            w1_spec = pl.BlockSpec((in_p, ht), lambda i, k: (0, k),
                                   pipeline_mode=pl.Buffered(1))
            w2_spec = pl.BlockSpec((ht, out_p), lambda i, k: (k, 0),
                                   pipeline_mode=pl.Buffered(1))
        else:
            w1_spec = pl.BlockSpec((in_p, ht), lambda i, k: (0, k))
            w2_spec = pl.BlockSpec((ht, out_p), lambda i, k: (k, 0))

        return pl.pallas_call(
            mlp_block_kernel,
            out_shape=jax.ShapeDtypeStruct((rows_p, out_p), out_dtype),
            grid_spec=pltpu.PrefetchScalarGridSpec(
                num_scalar_prefetch=0,
                grid=(num_i, num_k),
                in_specs=[
                    pl.BlockSpec((rt, in_p), lambda i, k: (i, 0)),    # x row tile
                    w1_spec,                                          # w1 column tile
                    pl.BlockSpec((1, ht), lambda i, k: (0, k)),       # b1 tile
                    w2_spec,                                          # w2 row tile
                    pl.BlockSpec((1, out_p), lambda i, k: (0, 0)),    # b2 (resident)
                ],
                out_specs=pl.BlockSpec((rt, out_p), lambda i, k: (i, 0)),
                scratch_shapes=[pltpu.VMEM((rt, out_p), jnp.float32)],
            ),
            compiler_params=pltpu.CompilerParams(
                dimension_semantics=("parallel", "arbitrary"),
                vmem_limit_bytes=vmem_limit,
            ),
            cost_estimate=cost,
        )(x_p, w1_p, b1_p, w2_p, b2_p)

    if num_k == 1:
        try:
            y_pad = _call(single_buffer_weights=True)
        except Exception:
            # Fallback if this build rejects pipeline_mode=pl.Buffered(1).
            y_pad = _call(single_buffer_weights=False)
    else:
        y_pad = _call(single_buffer_weights=False)

    return y_pad[:rows, :out_dim]


# ---------------------------------------------------------------------------
# Pure-JAX references
# ---------------------------------------------------------------------------
def mlp_block_ref_f32(x, w1, b1, w2, b2):
    """Pure-JAX f32 reference of the PyTorch forward pass."""
    h = x.astype(jnp.float32) @ w1.astype(jnp.float32) + jnp.reshape(b1, (1, -1))
    h = _gelu_tanh_f32(h)
    y = h @ w2.astype(jnp.float32) + jnp.reshape(b2, (1, -1))
    return y.astype(x.dtype)


def mlp_block_ref_bf16(x, w1, b1, w2, b2):
    """Emulates the kernel's bf16 MXU path (bf16 operands, f32 accumulation)."""
    f = lambda a: a.astype(jnp.bfloat16).astype(jnp.float32)
    h = f(x) @ f(w1) + jnp.reshape(b1, (1, -1)).astype(jnp.float32)
    h = _gelu_tanh_f32(h)
    y = f(h) @ f(w2) + jnp.reshape(b2, (1, -1)).astype(jnp.float32)
    return y.astype(x.dtype)


if __name__ == "__main__":
    # Small shapes consistent with the module's forward (Linear acts on the
    # last dim; leading dims are flattened to rows).
    BATCH, SEQ, IN_DIM, HIDDEN, OUT_DIM = 2, 8, 16, 32, 16

    key = jax.random.PRNGKey(0)
    kx, k1, k2, k3, k4 = jax.random.split(key, 5)

    x3d = jax.random.normal(kx, (BATCH, SEQ, IN_DIM), dtype=jnp.float32)
    w1 = jax.random.normal(k1, (IN_DIM, HIDDEN), dtype=jnp.float32) / math.sqrt(IN_DIM)
    b1 = jax.random.normal(k2, (HIDDEN,), dtype=jnp.float32) * 0.01
    w2 = jax.random.normal(k3, (HIDDEN, OUT_DIM), dtype=jnp.float32) / math.sqrt(HIDDEN)
    b2 = jax.random.normal(k4, (OUT_DIM,), dtype=jnp.float32) * 0.01

    x2d = x3d.reshape(BATCH * SEQ, IN_DIM)

    # f32 compute path: tight check against the PyTorch-equivalent reference.
    out_f32 = mlp_block(x2d, w1, b1, w2, b2, compute_dtype=jnp.float32)
    jax.block_until_ready(out_f32)
    ref_f32 = mlp_block_ref_f32(x2d, w1, b1, w2, b2)
    assert jnp.allclose(out_f32, ref_f32, atol=1e-5, rtol=1e-5), "f32 mismatch vs reference"

    # bf16 MXU fast path (default): bf16 operands, f32 accumulation.
    out_bf16 = mlp_block(x2d, w1, b1, w2, b2)  # compute_dtype=bf16
    jax.block_until_ready(out_bf16)
    ref_bf16 = mlp_block_ref_bf16(x2d, w1, b1, w2, b2)
    assert jnp.allclose(out_bf16, ref_bf16, atol=5e-3, rtol=5e-3), \
        "bf16 mismatch vs bf16-emulating reference"
    assert jnp.allclose(out_bf16, ref_f32, atol=1e-1, rtol=1e-1), \
        "bf16 path drifted too far from f32 reference"

    out = out_bf16.reshape(BATCH, SEQ, OUT_DIM)
    jax.block_until_ready(out)
    print("KERNEL_OK")
</pallas_src>

<mosaic_0001>
module attributes {stable_mosaic.version = 11 : i64} {
  func.func @mlp_block_kernel(%arg0: i32, %arg1: i32, %arg2: memref<16x128xf32, #tpu.memory_space<vmem>>, %arg3: memref<128x128xf32, #tpu.memory_space<vmem>>, %arg4: memref<1x128xf32, #tpu.memory_space<vmem>>, %arg5: memref<128x128xf32, #tpu.memory_space<vmem>>, %arg6: memref<1x128xf32, #tpu.memory_space<vmem>>, %arg7: memref<16x128xf32, #tpu.memory_space<vmem>>, %arg8: memref<16x128xf32, #tpu.memory_space<vmem>>) attributes {dimension_semantics = [#tpu.dimension_semantics<parallel>, #tpu.dimension_semantics<arbitrary>], iteration_bounds = array<i64: 1, 1>, scalar_prefetch = 0 : i64, scratch_operands = 1 : i64, tpu.core_type = #tpu.core_type<tc>, window_params = [{transform_indices = @transform_0, window_bounds = array<i64: 16, 128>}, {pipeline_mode = #tpu.pipeline_mode<synchronous>, transform_indices = @transform_1, window_bounds = array<i64: 128, 128>}, {transform_indices = @transform_2, window_bounds = array<i64: 1, 128>}, {pipeline_mode = #tpu.pipeline_mode<synchronous>, transform_indices = @transform_3, window_bounds = array<i64: 128, 128>}, {pipeline_mode = #tpu.pipeline_mode<synchronous>, transform_indices = @transform_4, window_bounds = array<i64: 1, 128>}, {transform_indices = @transform_5, window_bounds = array<i64: 16, 128>}]} {
    %c0 = arith.constant 0 : index
    %c0_0 = arith.constant 0 : index
    %0 = vector.load %arg2[%c0, %c0_0] : memref<16x128xf32, #tpu.memory_space<vmem>>, vector<16x128xf32>
    %c0_1 = arith.constant 0 : index
    %c0_2 = arith.constant 0 : index
    %1 = vector.load %arg3[%c0_1, %c0_2] : memref<128x128xf32, #tpu.memory_space<vmem>>, vector<128x128xf32>
    %cst = arith.constant dense<0.000000e+00> : vector<16x128xf32>
    %2 = tpu.matmul %0, %1, %cst {dimension_numbers = #tpu.dot_dimension_numbers<[1], [0], [0], [1], [0, 0, 1, 1], [], []>} : vector<16x128xf32>, vector<128x128xf32>, vector<16x128xf32> -> vector<16x128xf32>
    %c0_3 = arith.constant 0 : index
    %c0_4 = arith.constant 0 : index
    %3 = vector.load %arg4[%c0_3, %c0_4] : memref<1x128xf32, #tpu.memory_space<vmem>>, vector<1x128xf32>
    %4 = vector.broadcast %3 : vector<1x128xf32> to vector<16x128xf32>
    %5 = arith.addf %2, %4 : vector<16x128xf32>
    %cst_5 = arith.constant 5.000000e-01 : f32
    %6 = vector.broadcast %cst_5 : f32 to vector<16x128xf32>
    %7 = arith.mulf %6, %5 : vector<16x128xf32>
    %cst_6 = arith.constant 4.471500e-02 : f32
    %8 = vector.broadcast %cst_6 : f32 to vector<16x128xf32>
    %9 = arith.mulf %8, %5 : vector<16x128xf32>
    %10 = arith.mulf %9, %5 : vector<16x128xf32>
    %11 = arith.mulf %10, %5 : vector<16x128xf32>
    %12 = arith.addf %5, %11 : vector<16x128xf32>
    %cst_7 = arith.constant 0.797884583 : f32
    %13 = vector.broadcast %cst_7 : f32 to vector<16x128xf32>
    %14 = arith.mulf %13, %12 : vector<16x128xf32>
    %15 = math.tanh %14 : vector<16x128xf32>
    %cst_8 = arith.constant 1.000000e+00 : f32
    %16 = vector.broadcast %cst_8 : f32 to vector<16x128xf32>
    %17 = arith.addf %16, %15 : vector<16x128xf32>
    %18 = arith.mulf %7, %17 : vector<16x128xf32>
    %c0_9 = arith.constant 0 : index
    %c0_10 = arith.constant 0 : index
    %19 = vector.load %arg5[%c0_9, %c0_10] : memref<128x128xf32, #tpu.memory_space<vmem>>, vector<128x128xf32>
    %cst_11 = arith.constant dense<0.000000e+00> : vector<16x128xf32>
    %20 = tpu.matmul %18, %19, %cst_11 {dimension_numbers = #tpu.dot_dimension_numbers<[1], [0], [0], [1], [0, 0, 1, 1], [], []>} : vector<16x128xf32>, vector<128x128xf32>, vector<16x128xf32> -> vector<16x128xf32>
    %c0_i32 = arith.constant 0 : i32
    %21 = arith.cmpi eq, %arg1, %c0_i32 : i32
    %22 = arith.extui %21 : i1 to i32
    %c0_i32_12 = arith.constant 0 : i32
    %23 = arith.cmpi ne, %22, %c0_i32_12 : i32
    scf.if %23 {
      %c0_17 = arith.constant 0 : index
      %c0_18 = arith.constant 0 : index
      %30 = vector.load %arg8[%c0_17, %c0_18] : memref<16x128xf32, #tpu.memory_space<vmem>>, vector<16x128xf32>
      tpu.vector_store %arg8[%c0_17, %c0_18], %20 {strides = array<i32>} : memref<16x128xf32, #tpu.memory_space<vmem>>, vector<16x128xf32>,
    } else {
    }
    %c0_i32_13 = arith.constant 0 : i32
    %24 = arith.cmpi sgt, %arg1, %c0_i32_13 : i32
    %25 = arith.extui %24 : i1 to i32
    %c0_i32_14 = arith.constant 0 : i32
    %26 = arith.cmpi ne, %25, %c0_i32_14 : i32
    scf.if %26 {
      %c0_17 = arith.constant 0 : index
      %c0_18 = arith.constant 0 : index
      %30 = vector.load %arg8[%c0_17, %c0_18] : memref<16x128xf32, #tpu.memory_space<vmem>>, vector<16x128xf32>
      %31 = arith.addf %30, %20 : vector<16x128xf32>
      %c0_19 = arith.constant 0 : index
      %c0_20 = arith.constant 0 : index
      %32 = vector.load %arg8[%c0_19, %c0_20] : memref<16x128xf32, #tpu.memory_space<vmem>>, vector<16x128xf32>
      tpu.vector_store %arg8[%c0_19, %c0_20], %31 {strides = array<i32>} : memref<16x128xf32, #tpu.memory_space<vmem>>, vector<16x128xf32>,
    } else {
    }
    %c0_i32_15 = arith.constant 0 : i32
    %27 = arith.cmpi eq, %arg1, %c0_i32_15 : i32
    %28 = arith.extui %27 : i1 to i32
    %c0_i32_16 = arith.constant 0 : i32
    %29 = arith.cmpi ne, %28, %c0_i32_16 : i32
    scf.if %29 {
      %c0_17 = arith.constant 0 : index
      %c0_18 = arith.constant 0 : index
      %30 = vector.load %arg8[%c0_17, %c0_18] : memref<16x128xf32, #tpu.memory_space<vmem>>, vector<16x128xf32>
      %c0_19 = arith.constant 0 : index
      %c0_20 = arith.constant 0 : index
      %31 = vector.load %arg6[%c0_19, %c0_20] : memref<1x128xf32, #tpu.memory_space<vmem>>, vector<1x128xf32>
      %32 = vector.broadcast %31 : vector<1x128xf32> to vector<16x128xf32>
      %33 = arith.addf %30, %32 : vector<16x128xf32>
      %c0_21 = arith.constant 0 : index
      %c0_22 = arith.constant 0 : index
      %34 = vector.load %arg7[%c0_21, %c0_22] : memref<16x128xf32, #tpu.memory_space<vmem>>, vector<16x128xf32>
      tpu.vector_store %arg7[%c0_21, %c0_22], %33 {strides = array<i32>} : memref<16x128xf32, #tpu.memory_space<vmem>>, vector<16x128xf32>,
    } else {
    }
    return
  }
  func.func @transform_0(%arg0: i32, %arg1: i32) -> (i32, i32) {
    %c0_i32 = arith.constant 0 : i32
    %c0_i32_0 = arith.constant 0 : i32
    return %arg0, %c0_i32 : i32, i32
  }
  func.func @transform_1(%arg0: i32, %arg1: i32) -> (i32, i32) {
    %c0_i32 = arith.constant 0 : i32
    %c0_i32_0 = arith.constant 0 : i32
    return %c0_i32, %arg1 : i32, i32
  }
  func.func @transform_2(%arg0: i32, %arg1: i32) -> (i32, i32) {
    %c0_i32 = arith.constant 0 : i32
    %c0_i32_0 = arith.constant 0 : i32
    return %c0_i32, %arg1 : i32, i32
  }
  func.func @transform_3(%arg0: i32, %arg1: i32) -> (i32, i32) {
    %c0_i32 = arith.constant 0 : i32
    %c0_i32_0 = arith.constant 0 : i32
    return %arg1, %c0_i32 : i32, i32
  }
  func.func @transform_4(%arg0: i32, %arg1: i32) -> (i32, i32) {
    %c0_i32 = arith.constant 0 : i32
    %c0_i32_0 = arith.constant 0 : i32
    %c0_i32_1 = arith.constant 0 : i32
    return %c0_i32, %c0_i32_0 : i32, i32
  }
  func.func @transform_5(%arg0: i32, %arg1: i32) -> (i32, i32) {
    %c0_i32 = arith.constant 0 : i32
    %c0_i32_0 = arith.constant 0 : i32
    return %arg0, %c0_i32 : i32, i32
  }
}

module attributes {stable_mosaic.version = 11 : i64} {
  func.func @mlp_block_kernel(%arg0: i32, %arg1: i32, %arg2: memref<16x128xf32, #tpu.memory_space<vmem>>, %arg3: memref<128x128xf32, #tpu.memory_space<vmem>>, %arg4: memref<1x128xf32, #tpu.memory_space<vmem>>, %arg5: memref<128x128xf32, #tpu.memory_space<vmem>>, %arg6: memref<1x128xf32, #tpu.memory_space<vmem>>, %arg7: memref<16x128xf32, #tpu.memory_space<vmem>>, %arg8: memref<16x128xf32, #tpu.memory_space<vmem>>) attributes {dimension_semantics = [#tpu.dimension_semantics<parallel>, #tpu.dimension_semantics<arbitrary>], iteration_bounds = array<i64: 1, 1>, scalar_prefetch = 0 : i64, scratch_operands = 1 : i64, tpu.core_type = #tpu.core_type<tc>, window_params = [{transform_indices = @transform_0, window_bounds = array<i64: 16, 128>}, {transform_indices = @transform_1, window_bounds = array<i64: 128, 128>}, {transform_indices = @transform_2, window_bounds = array<i64: 1, 128>}, {transform_indices = @transform_3, window_bounds = array<i64: 128, 128>}, {pipeline_mode = #tpu.pipeline_mode<synchronous>, transform_indices = @transform_4, window_bounds = array<i64: 1, 128>}, {transform_indices = @transform_5, window_bounds = array<i64: 16, 128>}]} {
    %c0 = arith.constant 0 : index
    %c0_0 = arith.constant 0 : index
    %0 = vector.load %arg2[%c0, %c0_0] : memref<16x128xf32, #tpu.memory_space<vmem>>, vector<16x128xf32>
    %c0_1 = arith.constant 0 : index
    %c0_2 = arith.constant 0 : index
    %1 = vector.load %arg3[%c0_1, %c0_2] : memref<128x128xf32, #tpu.memory_space<vmem>>, vector<128x128xf32>
    %cst = arith.constant dense<0.000000e+00> : vector<16x128xf32>
    %2 = tpu.matmul %0, %1, %cst {dimension_numbers = #tpu.dot_dimension_numbers<[1], [0], [0], [1], [0, 0, 1, 1], [], []>} : vector<16x128xf32>, vector<128x128xf32>, vector<16x128xf32> -> vector<16x128xf32>
    %c0_3 = arith.constant 0 : index
    %c0_4 = arith.constant 0 : index
    %3 = vector.load %arg4[%c0_3, %c0_4] : memref<1x128xf32, #tpu.memory_space<vmem>>, vector<1x128xf32>
    %4 = vector.broadcast %3 : vector<1x128xf32> to vector<16x128xf32>
    %5 = arith.addf %2, %4 : vector<16x128xf32>
    %cst_5 = arith.constant 5.000000e-01 : f32
    %6 = vector.broadcast %cst_5 : f32 to vector<16x128xf32>
    %7 = arith.mulf %6, %5 : vector<16x128xf32>
    %cst_6 = arith.constant 4.471500e-02 : f32
    %8 = vector.broadcast %cst_6 : f32 to vector<16x128xf32>
    %9 = arith.mulf %8, %5 : vector<16x128xf32>
    %10 = arith.mulf %9, %5 : vector<16x128xf32>
    %11 = arith.mulf %10, %5 : vector<16x128xf32>
    %12 = arith.addf %5, %11 : vector<16x128xf32>
    %cst_7 = arith.constant 0.797884583 : f32
    %13 = vector.broadcast %cst_7 : f32 to vector<16x128xf32>
    %14 = arith.mulf %13, %12 : vector<16x128xf32>
    %15 = math.tanh %14 : vector<16x128xf32>
    %cst_8 = arith.constant 1.000000e+00 : f32
    %16 = vector.broadcast %cst_8 : f32 to vector<16x128xf32>
    %17 = arith.addf %16, %15 : vector<16x128xf32>
    %18 = arith.mulf %7, %17 : vector<16x128xf32>
    %c0_9 = arith.constant 0 : index
    %c0_10 = arith.constant 0 : index
    %19 = vector.load %arg5[%c0_9, %c0_10] : memref<128x128xf32, #tpu.memory_space<vmem>>, vector<128x128xf32>
    %cst_11 = arith.constant dense<0.000000e+00> : vector<16x128xf32>
    %20 = tpu.matmul %18, %19, %cst_11 {dimension_numbers = #tpu.dot_dimension_numbers<[1], [0], [0], [1], [0, 0, 1, 1], [], []>} : vector<16x128xf32>, vector<128x128xf32>, vector<16x128xf32> -> vector<16x128xf32>
    %c0_i32 = arith.constant 0 : i32
    %21 = arith.cmpi eq, %arg1, %c0_i32 : i32
    %22 = arith.extui %21 : i1 to i32
    %c0_i32_12 = arith.constant 0 : i32
    %23 = arith.cmpi ne, %22, %c0_i32_12 : i32
    scf.if %23 {
      %c0_17 = arith.constant 0 : index
      %c0_18 = arith.constant 0 : index
      %30 = vector.load %arg8[%c0_17, %c0_18] : memref<16x128xf32, #tpu.memory_space<vmem>>, vector<16x128xf32>
      tpu.vector_store %arg8[%c0_17, %c0_18], %20 {strides = array<i32>} : memref<16x128xf32, #tpu.memory_space<vmem>>, vector<16x128xf32>,
    } else {
    }
    %c0_i32_13 = arith.constant 0 : i32
    %24 = arith.cmpi sgt, %arg1, %c0_i32_13 : i32
    %25 = arith.extui %24 : i1 to i32
    %c0_i32_14 = arith.constant 0 : i32
    %26 = arith.cmpi ne, %25, %c0_i32_14 : i32
    scf.if %26 {
      %c0_17 = arith.constant 0 : index
      %c0_18 = arith.constant 0 : index
      %30 = vector.load %arg8[%c0_17, %c0_18] : memref<16x128xf32, #tpu.memory_space<vmem>>, vector<16x128xf32>
      %31 = arith.addf %30, %20 : vector<16x128xf32>
      %c0_19 = arith.constant 0 : index
      %c0_20 = arith.constant 0 : index
      %32 = vector.load %arg8[%c0_19, %c0_20] : memref<16x128xf32, #tpu.memory_space<vmem>>, vector<16x128xf32>
      tpu.vector_store %arg8[%c0_19, %c0_20], %31 {strides = array<i32>} : memref<16x128xf32, #tpu.memory_space<vmem>>, vector<16x128xf32>,
    } else {
    }
    %c0_i32_15 = arith.constant 0 : i32
    %27 = arith.cmpi eq, %arg1, %c0_i32_15 : i32
    %28 = arith.extui %27 : i1 to i32
    %c0_i32_16 = arith.constant 0 : i32
    %29 = arith.cmpi ne, %28, %c0_i32_16 : i32
    scf.if %29 {
      %c0_17 = arith.constant 0 : index
      %c0_18 = arith.constant 0 : index
      %30 = vector.load %arg8[%c0_17, %c0_18] : memref<16x128xf32, #tpu.memory_space<vmem>>, vector<16x128xf32>
      %c0_19 = arith.constant 0 : index
      %c0_20 = arith.constant 0 : index
      %31 = vector.load %arg6[%c0_19, %c0_20] : memref<1x128xf32, #tpu.memory_space<vmem>>, vector<1x128xf32>
      %32 = vector.broadcast %31 : vector<1x128xf32> to vector<16x128xf32>
      %33 = arith.addf %30, %32 : vector<16x128xf32>
      %c0_21 = arith.constant 0 : index
      %c0_22 = arith.constant 0 : index
      %34 = vector.load %arg7[%c0_21, %c0_22] : memref<16x128xf32, #tpu.memory_space<vmem>>, vector<16x128xf32>
      tpu.vector_store %arg7[%c0_21, %c0_22], %33 {strides = array<i32>} : memref<16x128xf32, #tpu.memory_space<vmem>>, vector<16x128xf32>,
    } else {
    }
    return
  }
  func.func @transform_0(%arg0: i32, %arg1: i32) -> (i32, i32) {
    %c0_i32 = arith.constant 0 : i32
    %c0_i32_0 = arith.constant 0 : i32
    return %arg0, %c0_i32 : i32, i32
  }
  func.func @transform_1(%arg0: i32, %arg1: i32) -> (i32, i32) {
    %c0_i32 = arith.constant 0 : i32
    %c0_i32_0 = arith.constant 0 : i32
    return %c0_i32, %arg1 : i32, i32
  }
  func.func @transform_2(%arg0: i32, %arg1: i32) -> (i32, i32) {
    %c0_i32 = arith.constant 0 : i32
    %c0_i32_0 = arith.constant 0 : i32
    return %c0_i32, %arg1 : i32, i32
  }
  func.func @transform_3(%arg0: i32, %arg1: i32) -> (i32, i32) {
    %c0_i32 = arith.constant 0 : i32
    %c0_i32_0 = arith.constant 0 : i32
    return %arg1, %c0_i32 : i32, i32
  }
  func.func @transform_4(%arg0: i32, %arg1: i32) -> (i32, i32) {
    %c0_i32 = arith.constant 0 : i32
    %c0_i32_0 = arith.constant 0 : i32
    %c0_i32_1 = arith.constant 0 : i32
    return %c0_i32, %c0_i32_0 : i32, i32
  }
  func.func @transform_5(%arg0: i32, %arg1: i32) -> (i32, i32) {
    %c0_i32 = arith.constant 0 : i32
    %c0_i32_0 = arith.constant 0 : i32
    return %arg0, %c0_i32 : i32, i32
  }
}

</mosaic_0001>

<llo_original>
// kernel: tpu_custom_call.1
$region0: #{tpu_custom_call.1}
  #allocation0 [shape = 'u32[]', space=smem, size = 0x4, offset = 0x4, fixed_abs, tag = 'smem constant byte address 0x4 - core index']
  #allocation1 [shape = 'u32[144,128]{1,0:T(1,128)}', space=vmem, size = 0x12000, scoped, tag = 'internal scratch']
  #allocation2 [shape = 'f32[16,128]{1,0:T(8,128)}', space=vmem, size = 0x2000, scoped, tag = 'scratch operand']
  %s0 = inlined_call_operand.hbm [shape: f32[16,128], index: 0, kind: input, shape index: {}]
  %s1 = inlined_call_operand.hbm [shape: f32[128,128], index: 1, kind: input, shape index: {}]
  %s2 = inlined_call_operand.vmem [shape: f32[1,128], index: 2, kind: input, shape index: {}]
  %s3 = inlined_call_operand.hbm [shape: f32[128,128], index: 3, kind: input, shape index: {}]
  %s4 = inlined_call_operand.vmem [shape: f32[1,128], index: 4, kind: input, shape index: {}]
  %s5 = inlined_call_operand.hbm [shape: f32[16,128], index: 5, kind: output, shape index: {}]
  %s6 = sld [smem:[#allocation0]]
  $region54: #{tpu_custom_call.1} parent=0
    _
  %s8 = ssub.s32 1, %s6
  %s9 = scalar_select 0, %s8, %s6
  $region1: #{tpu_custom_call.1} parent=0
    #allocation3 [shape = 'u8[8192]{0}', space=vmem, size = 0x2000, scoped, tag = 'input window, operand 0, single buffered']
    #allocation4 [shape = 's32[1]{0}', space=sflag, size = 0x4, scoped, tag = 'scoped memory for tpu_custom_call.1']
    #allocation5 [shape = 's32[1]{0}', space=sflag, size = 0x4, scoped, tag = 'scoped memory for tpu_custom_call.1']
    #allocation6 [shape = 'u8[65536]{0}', space=vmem, size = 0x10000, scoped, tag = 'input window, operand 1, single buffered']
    #allocation7 [shape = 's32[1]{0}', space=sflag, size = 0x4, scoped, tag = 'scoped memory for tpu_custom_call.1']
    #allocation8 [shape = 'u8[65536]{0}', space=vmem, size = 0x10000, scoped, tag = 'input window, operand 3, single buffered']
    #allocation9 [shape = 'u8[8192]{0}', space=vmem, size = 0x2000, scoped, tag = 'output window, operand 0, single buffered']
    %10 = vsyncpa [#allocation4], 0
    %11 = vsyncpa [#allocation7], 0
    %12 = vsyncpa [#allocation5], 0
    // Predicated region
    $region2: #{tpu_custom_call.1} parent=1 // pred_check
      _
    $region3: #{tpu_custom_call.1} parent=1 // pred_check_branch
      %14 = sbr.rel (0) target = $region5
    $region4: #{tpu_custom_call.1} parent=1 // pred_region
      %s16 = ssub.s32 256, 256
      %17 = vsyncadd [#allocation4], %s16
      %s18 = sshll.u32 [#allocation3], 4
      %s19 = int_to_ptr.vmem [resolvable:$true] %s18
      %24 = dma.hbm_to_vmem [thread:$0]  %s0, 256, %s19, [#allocation4], 128, 128, 8
    $region5: #{tpu_custom_call.1} parent=1 // pred_fallthru
      _
    // Predicated region
    $region6: #{tpu_custom_call.1} parent=1 // pred_check
      _
    $region7: #{tpu_custom_call.1} parent=1 // pred_check_branch
      %26 = sbr.rel (0) target = $region9
    $region8: #{tpu_custom_call.1} parent=1 // pred_region
      %s28 = ssub.s32 2048, 2048
      %29 = vsyncadd [#allocation7], %s28
      %s30 = sshll.u32 [#allocation6], 4
      %s31 = int_to_ptr.vmem [resolvable:$true] %s30
      %36 = dma.hbm_to_vmem [thread:$0]  %s1, 2048, %s31, [#allocation7], 128, 128, 8
    $region9: #{tpu_custom_call.1} parent=1 // pred_fallthru
      _
    // Predicated region
    $region10: #{tpu_custom_call.1} parent=1 // pred_check
      _
    $region11: #{tpu_custom_call.1} parent=1 // pred_check_branch
      %38 = sbr.rel (0) target = $region13
    $region12: #{tpu_custom_call.1} parent=1 // pred_region
      _
    $region13: #{tpu_custom_call.1} parent=1 // pred_fallthru
      _
    // Predicated region
    $region14: #{tpu_custom_call.1} parent=1 // pred_check
      _
    $region15: #{tpu_custom_call.1} parent=1 // pred_check_branch
      %40 = sbr.rel (0) target = $region17
    $region16: #{tpu_custom_call.1} parent=1 // pred_region
      %s42 = ssub.s32 2048, 2048
      %43 = vsyncadd [#allocation7], %s42
      %s44 = sshll.u32 [#allocation8], 4
      %s45 = int_to_ptr.vmem [resolvable:$true] %s44
      %50 = dma.hbm_to_vmem [thread:$0]  %s3, 2048, %s45, [#allocation7], 128, 128, 8
    $region17: #{tpu_custom_call.1} parent=1 // pred_fallthru
      _
    // Predicated region
    $region18: #{tpu_custom_call.1} parent=1 // pred_check
      _
    $region19: #{tpu_custom_call.1} parent=1 // pred_check_branch
      %52 = sbr.rel (0) target = $region21
    $region20: #{tpu_custom_call.1} parent=1 // pred_region
      _
    $region21: #{tpu_custom_call.1} parent=1 // pred_fallthru
      _
    // Predicated region
    $region22: #{tpu_custom_call.1} parent=1 // pred_check
      _
    $region23: #{tpu_custom_call.1} parent=1 // pred_check_branch
      %54 = sbr.rel (0) target = $region25
    $region24: #{tpu_custom_call.1} parent=1 // pred_region
      %55 = dma.done [#allocation4], 256
    $region25: #{tpu_custom_call.1} parent=1 // pred_fallthru
      _
    // Predicated region
    $region26: #{tpu_custom_call.1} parent=1 // pred_check
      _
    $region27: #{tpu_custom_call.1} parent=1 // pred_check_branch
      %57 = sbr.rel (0) target = $region29
    $region28: #{tpu_custom_call.1} parent=1 // pred_region
      %58 = dma.done [#allocation7], 2048
    $region29: #{tpu_custom_call.1} parent=1 // pred_fallthru
      _
    // Predicated region
    $region30: #{tpu_custom_call.1} parent=1 // pred_check
      _
    $region31: #{tpu_custom_call.1} parent=1 // pred_check_branch
      %60 = sbr.rel (0) target = $region33
    $region32: #{tpu_custom_call.1} parent=1 // pred_region
      %61 = dma.done [#allocation7], 2048
    $region33: #{tpu_custom_call.1} parent=1 // pred_fallthru
      _
    %v62 = vld [vmem:[#allocation3] sm:$0xff]
    %v63 = vld [vmem:[#allocation3 + $0x8] sm:$0xff]
    %v64 = vld [vmem:[#allocation6] sm:$0xff]
    %v65 = vld [vmem:[#allocation6 + $0x8] sm:$0xff]
    %v66 = vld [vmem:[#allocation6 + $0x10] sm:$0xff]
    %v67 = vld [vmem:[#allocation6 + $0x18] sm:$0xff]
    %v68 = vld [vmem:[#allocation6 + $0x20] sm:$0xff]
    %v69 = vld [vmem:[#allocation6 + $0x28] sm:$0xff]
    %v70 = vld [vmem:[#allocation6 + $0x30] sm:$0xff]
    %v71 = vld [vmem:[#allocation6 + $0x38] sm:$0xff]
    %v72 = vld [vmem:[#allocation6 + $0x40] sm:$0xff]
    %v73 = vld [vmem:[#allocation6 + $0x48] sm:$0xff]
    %v74 = vld [vmem:[#allocation6 + $0x50] sm:$0xff]
    %v75 = vld [vmem:[#allocation6 + $0x58] sm:$0xff]
    %v76 = vld [vmem:[#allocation6 + $0x60] sm:$0xff]
    %v77 = vld [vmem:[#allocation6 + $0x68] sm:$0xff]
    %v78 = vld [vmem:[#allocation6 + $0x70] sm:$0xff]
    %v79 = vld [vmem:[#allocation6 + $0x78] sm:$0xff]
    %v80 = vld [vmem:[%s2] sm:$0x1]
    %v82 = vlaneseq
    %v83 = vshrl.u32 %v82, 7
    %v84 = vsub.s32 0, %v83
    %v85 = vrot.slane %v80, %v84
    %87 = vmatprep.subr.mxu0 0.0
    %88 = vmatpush1.msra.mxu0 %v64
    %89 = vmatprep.subr.mxu0 0.0
    %90 = vmatpush1.msra.mxu0 %v65
    %91 = vmatprep.subr.mxu0 0.0
    %92 = vmatpush1.msra.mxu0 %v66
    %93 = vmatprep.subr.mxu0 0.0
    %94 = vmatpush1.msra.mxu0 %v67
    %95 = vmatprep.subr.mxu0 0.0
    %96 = vmatpush1.msra.mxu0 %v68
    %97 = vmatprep.subr.mxu0 0.0
    %98 = vmatpush1.msra.mxu0 %v69
    %99 = vmatprep.subr.mxu0 0.0
    %100 = vmatpush1.msra.mxu0 %v70
    %101 = vmatprep.subr.mxu0 0.0
    %102 = vmatpush1.msra.mxu0 %v71
    %103 = vmatprep.subr.mxu0 0.0
    %104 = vmatpush1.msra.mxu0 %v72
    %105 = vmatprep.subr.mxu0 0.0
    %106 = vmatpush1.msra.mxu0 %v73
    %107 = vmatprep.subr.mxu0 0.0
    %108 = vmatpush1.msra.mxu0 %v74
    %109 = vmatprep.subr.mxu0 0.0
    %110 = vmatpush1.msra.mxu0 %v75
    %111 = vmatprep.subr.mxu0 0.0
    %112 = vmatpush1.msra.mxu0 %v76
    %113 = vmatprep.subr.mxu0 0.0
    %114 = vmatpush1.msra.mxu0 %v77
    %115 = vmatprep.subr.mxu0 0.0
    %116 = vmatpush1.msra.mxu0 %v78
    %117 = vmatprep.subr.mxu0 0.0
    %118 = vmatpush1.msra.mxu0 %v79
    %119 = vmatprep.subr.mxu0 0.0
    %120 = vmatpush1.msra.mxu0 0.0
    %121 = vmatprep.subr.mxu0 0.0
    %122 = vmatpush1.msra.mxu0 0.0
    %123 = vmatprep.subr.mxu0 0.0
    %124 = vmatpush1.msra.mxu0 0.0
    %125 = vmatprep.subr.mxu0 0.0
    %126 = vmatpush1.msra.mxu0 0.0
    %127 = vmatprep.subr.mxu0 0.0
    %128 = vmatpush1.msra.mxu0 0.0
    %129 = vmatprep.subr.mxu0 0.0
    %130 = vmatpush1.msra.mxu0 0.0
    %131 = vmatprep.subr.mxu0 0.0
    %132 = vmatpush1.msra.mxu0 0.0
    %133 = vmatprep.subr.mxu0 0.0
    %134 = vmatpush1.msra.mxu0 0.0
    %135 = vmatprep.subr.mxu0 0.0
    %136 = vmatpush1.msra.mxu0 0.0
    %137 = vmatprep.subr.mxu0 0.0
    %138 = vmatpush1.msra.mxu0 0.0
    %139 = vmatprep.subr.mxu0 0.0
    %140 = vmatpush1.msra.mxu0 0.0
    %141 = vmatprep.subr.mxu0 0.0
    %142 = vmatpush1.msra.mxu0 0.0
    %143 = vmatprep.subr.mxu0 0.0
    %144 = vmatpush1.msra.mxu0 0.0
    %145 = vmatprep.subr.mxu0 0.0
    %146 = vmatpush1.msra.mxu0 0.0
    %147 = vmatprep.subr.mxu0 0.0
    %148 = vmatpush1.msra.mxu0 0.0
    %149 = vmatprep.subr.mxu0 0.0
    %150 = vmatpush1.msra.mxu0 0.0
    %151 = vmatprep.mubr.f32.mxu0 0.0
    %152 = vmatmul.mubr.f32.gmra.mrb[0].mxu0 %v62
    %v153 = vpop.f32.mrb[0].mxu0
    %v154 = vadd.f32 %v85, %v153
    %v155 = vpop.f32.mrb[0].mxu0
    %156 = vmatprep.mubr.f32.mxu0 0.0
    %157 = vmatmul.mubr.f32.gmra.mrb[0].mxu0 %v63
    %v158 = vpop.f32.mrb[0].mxu0
    %v159 = vadd.f32 %v85, %v158
    %v160 = vpop.f32.mrb[0].mxu0
    %161 = vdwg.mxu0
    %v162 = vmul.f32 %v154, 0.5
    %v163 = vmul.f32 %v159, 0.5
    %v164 = vmul.f32 %v154, 0.044715
    %v165 = vmul.f32 %v159, 0.044715
    %v166 = vmul.f32 %v164, %v154
    %v167 = vmul.f32 %v165, %v159
    %v168 = vmul.f32 %v166, %v154
    %v169 = vmul.f32 %v167, %v159
    %v170 = vadd.f32 %v154, %v168
    %v171 = vadd.f32 %v159, %v169
    %v172 = vmul.f32 %v170, 0.7978846
    %v173 = vmul.f32 %v171, 0.7978846
    %v174 = vtanh.pop %v172
    %v175 = vtanh.pop %v173
    %v176 = vadd.f32 %v174, 1.0
    %v177 = vadd.f32 %v175, 1.0
    %v178 = vmul.f32 %v162, %v176
    %v179 = vmul.f32 %v163, %v177
    %v180 = vld [vmem:[#allocation8] sm:$0xff]
    %v181 = vld [vmem:[#allocation8 + $0x8] sm:$0xff]
    %v182 = vld [vmem:[#allocation8 + $0x10] sm:$0xff]
    %v183 = vld [vmem:[#allocation8 + $0x18] sm:$0xff]
    %v184 = vld [vmem:[#allocation8 + $0x20] sm:$0xff]
    %v185 = vld [vmem:[#allocation8 + $0x28] sm:$0xff]
    %v186 = vld [vmem:[#allocation8 + $0x30] sm:$0xff]
    %v187 = vld [vmem:[#allocation8 + $0x38] sm:$0xff]
    %v188 = vld [vmem:[#allocation8 + $0x40] sm:$0xff]
    %v189 = vld [vmem:[#allocation8 + $0x48] sm:$0xff]
    %v190 = vld [vmem:[#allocation8 + $0x50] sm:$0xff]
    %v191 = vld [vmem:[#allocation8 + $0x58] sm:$0xff]
    %v192 = vld [vmem:[#allocation8 + $0x60] sm:$0xff]
    %v193 = vld [vmem:[#allocation8 + $0x68] sm:$0xff]
    %v194 = vld [vmem:[#allocation8 + $0x70] sm:$0xff]
    %v195 = vld [vmem:[#allocation8 + $0x78] sm:$0xff]
    %196 = vmatprep.subr.mxu0 0.0
    %197 = vmatpush1.msra.mxu0 %v180
    %198 = vmatprep.subr.mxu0 0.0
    %199 = vmatpush1.msra.mxu0 %v181
    %200 = vmatprep.subr.mxu0 0.0
    %201 = vmatpush1.msra.mxu0 %v182
    %202 = vmatprep.subr.mxu0 0.0
    %203 = vmatpush1.msra.mxu0 %v183
    %204 = vmatprep.subr.mxu0 0.0
    %205 = vmatpush1.msra.mxu0 %v184
    %206 = vmatprep.subr.mxu0 0.0
    %207 = vmatpush1.msra.mxu0 %v185
    %208 = vmatprep.subr.mxu0 0.0
    %209 = vmatpush1.msra.mxu0 %v186
    %210 = vmatprep.subr.mxu0 0.0
    %211 = vmatpush1.msra.mxu0 %v187
    %212 = vmatprep.subr.mxu0 0.0
    %213 = vmatpush1.msra.mxu0 %v188
    %214 = vmatprep.subr.mxu0 0.0
    %215 = vmatpush1.msra.mxu0 %v189
    %216 = vmatprep.subr.mxu0 0.0
    %217 = vmatpush1.msra.mxu0 %v190
    %218 = vmatprep.subr.mxu0 0.0
    %219 = vmatpush1.msra.mxu0 %v191
    %220 = vmatprep.subr.mxu0 0.0
    %221 = vmatpush1.msra.mxu0 %v192
    %222 = vmatprep.subr.mxu0 0.0
    %223 = vmatpush1.msra.mxu0 %v193
    %224 = vmatprep.subr.mxu0 0.0
    %225 = vmatpush1.msra.mxu0 %v194
    %226 = vmatprep.subr.mxu0 0.0
    %227 = vmatpush1.msra.mxu0 %v195
    %228 = vmatprep.subr.mxu0 0.0
    %229 = vmatpush1.msra.mxu0 0.0
    %230 = vmatprep.subr.mxu0 0.0
    %231 = vmatpush1.msra.mxu0 0.0
    %232 = vmatprep.subr.mxu0 0.0
    %233 = vmatpush1.msra.mxu0 0.0
    %234 = vmatprep.subr.mxu0 0.0
    %235 = vmatpush1.msra.mxu0 0.0
    %236 = vmatprep.subr.mxu0 0.0
    %237 = vmatpush1.msra.mxu0 0.0
    %238 = vmatprep.subr.mxu0 0.0
    %239 = vmatpush1.msra.mxu0 0.0
    %240 = vmatprep.subr.mxu0 0.0
    %241 = vmatpush1.msra.mxu0 0.0
    %242 = vmatprep.subr.mxu0 0.0
    %243 = vmatpush1.msra.mxu0 0.0
    %244 = vmatprep.subr.mxu0 0.0
    %245 = vmatpush1.msra.mxu0 0.0
    %246 = vmatprep.subr.mxu0 0.0
    %247 = vmatpush1.msra.mxu0 0.0
    %248 = vmatprep.subr.mxu0 0.0
    %249 = vmatpush1.msra.mxu0 0.0
    %250 = vmatprep.subr.mxu0 0.0
    %251 = vmatpush1.msra.mxu0 0.0
    %252 = vmatprep.subr.mxu0 0.0
    %253 = vmatpush1.msra.mxu0 0.0
    %254 = vmatprep.subr.mxu0 0.0
    %255 = vmatpush1.msra.mxu0 0.0
    %256 = vmatprep.subr.mxu0 0.0
    %257 = vmatpush1.msra.mxu0 0.0
    %258 = vmatprep.subr.mxu0 0.0
    %259 = vmatpush1.msra.mxu0 0.0
    %260 = vmatprep.mubr.f32.mxu0 0.0
    %261 = vmatmul.mubr.f32.gmra.mrb[0].mxu0 %v178
    %v262 = vpop.f32.mrb[0].mxu0
    %v263 = vadd.f32 0.0, %v262
    %v264 = vpop.f32.mrb[0].mxu0
    %265 = vmatprep.mubr.f32.mxu0 0.0
    %266 = vmatmul.mubr.f32.gmra.mrb[0].mxu0 %v179
    %v267 = vpop.f32.mrb[0].mxu0
    %v268 = vadd.f32 0.0, %v267
    %v269 = vpop.f32.mrb[0].mxu0
    %270 = vdwg.mxu0
    %p271 = scmp.eq.s32.totalorder 0, 0
    // Predicated region
    $region34: #{tpu_custom_call.1} parent=1 // pred_check
      %p272 = pneg %p271
    $region35: #{tpu_custom_call.1} parent=1 // pred_check_branch
      %274 = sbr.rel (%p272) target = $region37
    $region36: #{tpu_custom_call.1} parent=1 // pred_region
      %275 = vst [vmem:[#allocation2] sm:$0xff] %v263
      %276 = vst [vmem:[#allocation2 + $0x8] sm:$0xff] %v268
    $region37: #{tpu_custom_call.1} parent=1 // pred_fallthru
      _
    %p277 = scmp.gt.s32.totalorder 0, 0
    // Predicated region
    $region38: #{tpu_custom_call.1} parent=1 // pred_check
      %p278 = pneg %p277
    $region39: #{tpu_custom_call.1} parent=1 // pred_check_branch
      %280 = sbr.rel (%p278) target = $region41
    $region40: #{tpu_custom_call.1} parent=1 // pred_region
      %v281 = vld [vmem:[#allocation2] sm:$0xff]
      %v282 = vld [vmem:[#allocation2 + $0x8] sm:$0xff]
      %v283 = vadd.f32 %v281, %v263
      %v284 = vadd.f32 %v282, %v268
      %285 = vst [vmem:[#allocation2] sm:$0xff] %v283
      %286 = vst [vmem:[#allocation2 + $0x8] sm:$0xff] %v284
    $region41: #{tpu_custom_call.1} parent=1 // pred_fallthru
      _
    // Predicated region
    $region42: #{tpu_custom_call.1} parent=1 // pred_check
      %p287 = pneg %p271
    $region43: #{tpu_custom_call.1} parent=1 // pred_check_branch
      %289 = sbr.rel (%p287) target = $region45
    $region44: #{tpu_custom_call.1} parent=1 // pred_region
      %v290 = vld [vmem:[#allocation2] sm:$0xff]
      %v291 = vld [vmem:[#allocation2 + $0x8] sm:$0xff]
      %v292 = vld [vmem:[%s4] sm:$0x1]
      %v294 = vlaneseq
      %v295 = vshrl.u32 %v294, 7
      %v296 = vsub.s32 0, %v295
      %v297 = vrot.slane %v292, %v296
      %v299 = vadd.f32 %v290, %v297
      %v300 = vadd.f32 %v291, %v297
      %301 = vst [vmem:[#allocation9] sm:$0xff] %v299
      %302 = vst [vmem:[#allocation9 + $0x8] sm:$0xff] %v300
    $region45: #{tpu_custom_call.1} parent=1 // pred_fallthru
      _
    // Predicated region
    $region46: #{tpu_custom_call.1} parent=1 // pred_check
      _
    $region47: #{tpu_custom_call.1} parent=1 // pred_check_branch
      %304 = sbr.rel (0) target = $region49
    $region48: #{tpu_custom_call.1} parent=1 // pred_region
      %s306 = ssub.s32 256, 256
      %307 = vsyncadd [#allocation5], %s306
      %s308 = sshll.u32 [#allocation9], 4
      %s309 = int_to_ptr.vmem [resolvable:$true] %s308
      %314 = dma.vmem_to_hbm [thread:$0]  %s309, 256, %s5, [#allocation5], 128, 128, 8
    $region49: #{tpu_custom_call.1} parent=1 // pred_fallthru
      _
    // Predicated region
    $region50: #{tpu_custom_call.1} parent=1 // pred_check
      _
    $region51: #{tpu_custom_call.1} parent=1 // pred_check_branch
      %316 = sbr.rel (0) target = $region53
    $region52: #{tpu_custom_call.1} parent=1 // pred_region
      %317 = dma.done [#allocation5], 256
    $region53: #{tpu_custom_call.1} parent=1 // pred_fallthru
      _
    %318 = vsyncpa [#allocation4], 1
    %319 = vsyncpa [#allocation7], 1
    %320 = vsyncpa [#allocation5], 1

// kernel: tpu_custom_call.1
$region0: #{tpu_custom_call.1}
  #allocation0 [shape = 'u32[]', space=smem, size = 0x4, offset = 0x4, fixed_abs, tag = 'smem constant byte address 0x4 - core index']
  #allocation1 [shape = 'u32[144,128]{1,0:T(1,128)}', space=vmem, size = 0x12000, scoped, tag = 'internal scratch']
  #allocation2 [shape = 'f32[16,128]{1,0:T(8,128)}', space=vmem, size = 0x2000, scoped, tag = 'scratch operand']
  %s0 = inlined_call_operand.hbm [shape: f32[16,128], index: 0, kind: input, shape index: {}]
  %s1 = inlined_call_operand.hbm [shape: f32[128,128], index: 1, kind: input, shape index: {}]
  %s2 = inlined_call_operand.vmem [shape: f32[1,128], index: 2, kind: input, shape index: {}]
  %s3 = inlined_call_operand.hbm [shape: f32[128,128], index: 3, kind: input, shape index: {}]
  %s4 = inlined_call_operand.vmem [shape: f32[1,128], index: 4, kind: input, shape index: {}]
  %s5 = inlined_call_operand.hbm [shape: f32[16,128], index: 5, kind: output, shape index: {}]
  %s6 = sld [smem:[#allocation0]]
  $region54: #{tpu_custom_call.1} parent=0
    _
  %s8 = ssub.s32 1, %s6
  %s9 = scalar_select 0, %s8, %s6
  $region1: #{tpu_custom_call.1} parent=0
    #allocation3 [shape = 'u8[8192]{0}', space=vmem, size = 0x2000, scoped, tag = 'input window, operand 0, single buffered']
    #allocation4 [shape = 's32[1]{0}', space=sflag, size = 0x4, scoped, tag = 'scoped memory for tpu_custom_call.1']
    #allocation5 [shape = 's32[1]{0}', space=sflag, size = 0x4, scoped, tag = 'scoped memory for tpu_custom_call.1']
    #allocation6 [shape = 'u8[65536]{0}', space=vmem, size = 0x10000, scoped, tag = 'input window, operand 1, single buffered']
    #allocation7 [shape = 's32[1]{0}', space=sflag, size = 0x4, scoped, tag = 'scoped memory for tpu_custom_call.1']
    #allocation8 [shape = 'u8[65536]{0}', space=vmem, size = 0x10000, scoped, tag = 'input window, operand 3, single buffered']
    #allocation9 [shape = 'u8[8192]{0}', space=vmem, size = 0x2000, scoped, tag = 'output window, operand 0, single buffered']
    %10 = vsyncpa [#allocation4], 0
    %11 = vsyncpa [#allocation7], 0
    %12 = vsyncpa [#allocation5], 0
    // Predicated region
    $region2: #{tpu_custom_call.1} parent=1 // pred_check
      _
    $region3: #{tpu_custom_call.1} parent=1 // pred_check_branch
      %14 = sbr.rel (0) target = $region5
    $region4: #{tpu_custom_call.1} parent=1 // pred_region
      %s16 = ssub.s32 256, 256
      %17 = vsyncadd [#allocation4], %s16
      %s18 = sshll.u32 [#allocation3], 4
      %s19 = int_to_ptr.vmem [resolvable:$true] %s18
      %24 = dma.hbm_to_vmem [thread:$0]  %s0, 256, %s19, [#allocation4], 128, 128, 8
    $region5: #{tpu_custom_call.1} parent=1 // pred_fallthru
      _
    // Predicated region
    $region6: #{tpu_custom_call.1} parent=1 // pred_check
      _
    $region7: #{tpu_custom_call.1} parent=1 // pred_check_branch
      %26 = sbr.rel (0) target = $region9
    $region8: #{tpu_custom_call.1} parent=1 // pred_region
      %s28 = ssub.s32 2048, 2048
      %29 = vsyncadd [#allocation7], %s28
      %s30 = sshll.u32 [#allocation6], 4
      %s31 = int_to_ptr.vmem [resolvable:$true] %s30
      %36 = dma.hbm_to_vmem [thread:$0]  %s1, 2048, %s31, [#allocation7], 128, 128, 8
    $region9: #{tpu_custom_call.1} parent=1 // pred_fallthru
      _
    // Predicated region
    $region10: #{tpu_custom_call.1} parent=1 // pred_check
      _
    $region11: #{tpu_custom_call.1} parent=1 // pred_check_branch
      %38 = sbr.rel (0) target = $region13
    $region12: #{tpu_custom_call.1} parent=1 // pred_region
      _
    $region13: #{tpu_custom_call.1} parent=1 // pred_fallthru
      _
    // Predicated region
    $region14: #{tpu_custom_call.1} parent=1 // pred_check
      _
    $region15: #{tpu_custom_call.1} parent=1 // pred_check_branch
      %40 = sbr.rel (0) target = $region17
    $region16: #{tpu_custom_call.1} parent=1 // pred_region
      %s42 = ssub.s32 2048, 2048
      %43 = vsyncadd [#allocation7], %s42
      %s44 = sshll.u32 [#allocation8], 4
      %s45 = int_to_ptr.vmem [resolvable:$true] %s44
      %50 = dma.hbm_to_vmem [thread:$0]  %s3, 2048, %s45, [#allocation7], 128, 128, 8
    $region17: #{tpu_custom_call.1} parent=1 // pred_fallthru
      _
    // Predicated region
    $region18: #{tpu_custom_call.1} parent=1 // pred_check
      _
    $region19: #{tpu_custom_call.1} parent=1 // pred_check_branch
      %52 = sbr.rel (0) target = $region21
    $region20: #{tpu_custom_call.1} parent=1 // pred_region
      _
    $region21: #{tpu_custom_call.1} parent=1 // pred_fallthru
      _
    // Predicated region
    $region22: #{tpu_custom_call.1} parent=1 // pred_check
      _
    $region23: #{tpu_custom_call.1} parent=1 // pred_check_branch
      %54 = sbr.rel (0) target = $region25
    $region24: #{tpu_custom_call.1} parent=1 // pred_region
      %55 = dma.done [#allocation4], 256
    $region25: #{tpu_custom_call.1} parent=1 // pred_fallthru
      _
    // Predicated region
    $region26: #{tpu_custom_call.1} parent=1 // pred_check
      _
    $region27: #{tpu_custom_call.1} parent=1 // pred_check_branch
      %57 = sbr.rel (0) target = $region29
    $region28: #{tpu_custom_call.1} parent=1 // pred_region
      %58 = dma.done [#allocation7], 2048
    $region29: #{tpu_custom_call.1} parent=1 // pred_fallthru
      _
    // Predicated region
    $region30: #{tpu_custom_call.1} parent=1 // pred_check
      _
    $region31: #{tpu_custom_call.1} parent=1 // pred_check_branch
      %60 = sbr.rel (0) target = $region33
    $region32: #{tpu_custom_call.1} parent=1 // pred_region
      %61 = dma.done [#allocation7], 2048
    $region33: #{tpu_custom_call.1} parent=1 // pred_fallthru
      _
    %v62 = vld [vmem:[#allocation3] sm:$0xff]
    %v63 = vld [vmem:[#allocation3 + $0x8] sm:$0xff]
    %v64 = vld [vmem:[#allocation6] sm:$0xff]
    %v65 = vld [vmem:[#allocation6 + $0x8] sm:$0xff]
    %v66 = vld [vmem:[#allocation6 + $0x10] sm:$0xff]
    %v67 = vld [vmem:[#allocation6 + $0x18] sm:$0xff]
    %v68 = vld [vmem:[#allocation6 + $0x20] sm:$0xff]
    %v69 = vld [vmem:[#allocation6 + $0x28] sm:$0xff]
    %v70 = vld [vmem:[#allocation6 + $0x30] sm:$0xff]
    %v71 = vld [vmem:[#allocation6 + $0x38] sm:$0xff]
    %v72 = vld [vmem:[#allocation6 + $0x40] sm:$0xff]
    %v73 = vld [vmem:[#allocation6 + $0x48] sm:$0xff]
    %v74 = vld [vmem:[#allocation6 + $0x50] sm:$0xff]
    %v75 = vld [vmem:[#allocation6 + $0x58] sm:$0xff]
    %v76 = vld [vmem:[#allocation6 + $0x60] sm:$0xff]
    %v77 = vld [vmem:[#allocation6 + $0x68] sm:$0xff]
    %v78 = vld [vmem:[#allocation6 + $0x70] sm:$0xff]
    %v79 = vld [vmem:[#allocation6 + $0x78] sm:$0xff]
    %v80 = vld [vmem:[%s2] sm:$0x1]
    %v82 = vlaneseq
    %v83 = vshrl.u32 %v82, 7
    %v84 = vsub.s32 0, %v83
    %v85 = vrot.slane %v80, %v84
    %87 = vmatprep.subr.mxu0 0.0
    %88 = vmatpush1.msra.mxu0 %v64
    %89 = vmatprep.subr.mxu0 0.0
    %90 = vmatpush1.msra.mxu0 %v65
    %91 = vmatprep.subr.mxu0 0.0
    %92 = vmatpush1.msra.mxu0 %v66
    %93 = vmatprep.subr.mxu0 0.0
    %94 = vmatpush1.msra.mxu0 %v67
    %95 = vmatprep.subr.mxu0 0.0
    %96 = vmatpush1.msra.mxu0 %v68
    %97 = vmatprep.subr.mxu0 0.0
    %98 = vmatpush1.msra.mxu0 %v69
    %99 = vmatprep.subr.mxu0 0.0
    %100 = vmatpush1.msra.mxu0 %v70
    %101 = vmatprep.subr.mxu0 0.0
    %102 = vmatpush1.msra.mxu0 %v71
    %103 = vmatprep.subr.mxu0 0.0
    %104 = vmatpush1.msra.mxu0 %v72
    %105 = vmatprep.subr.mxu0 0.0
    %106 = vmatpush1.msra.mxu0 %v73
    %107 = vmatprep.subr.mxu0 0.0
    %108 = vmatpush1.msra.mxu0 %v74
    %109 = vmatprep.subr.mxu0 0.0
    %110 = vmatpush1.msra.mxu0 %v75
    %111 = vmatprep.subr.mxu0 0.0
    %112 = vmatpush1.msra.mxu0 %v76
    %113 = vmatprep.subr.mxu0 0.0
    %114 = vmatpush1.msra.mxu0 %v77
    %115 = vmatprep.subr.mxu0 0.0
    %116 = vmatpush1.msra.mxu0 %v78
    %117 = vmatprep.subr.mxu0 0.0
    %118 = vmatpush1.msra.mxu0 %v79
    %119 = vmatprep.subr.mxu0 0.0
    %120 = vmatpush1.msra.mxu0 0.0
    %121 = vmatprep.subr.mxu0 0.0
    %122 = vmatpush1.msra.mxu0 0.0
    %123 = vmatprep.subr.mxu0 0.0
    %124 = vmatpush1.msra.mxu0 0.0
    %125 = vmatprep.subr.mxu0 0.0
    %126 = vmatpush1.msra.mxu0 0.0
    %127 = vmatprep.subr.mxu0 0.0
    %128 = vmatpush1.msra.mxu0 0.0
    %129 = vmatprep.subr.mxu0 0.0
    %130 = vmatpush1.msra.mxu0 0.0
    %131 = vmatprep.subr.mxu0 0.0
    %132 = vmatpush1.msra.mxu0 0.0
    %133 = vmatprep.subr.mxu0 0.0
    %134 = vmatpush1.msra.mxu0 0.0
    %135 = vmatprep.subr.mxu0 0.0
    %136 = vmatpush1.msra.mxu0 0.0
    %137 = vmatprep.subr.mxu0 0.0
    %138 = vmatpush1.msra.mxu0 0.0
    %139 = vmatprep.subr.mxu0 0.0
    %140 = vmatpush1.msra.mxu0 0.0
    %141 = vmatprep.subr.mxu0 0.0
    %142 = vmatpush1.msra.mxu0 0.0
    %143 = vmatprep.subr.mxu0 0.0
    %144 = vmatpush1.msra.mxu0 0.0
    %145 = vmatprep.subr.mxu0 0.0
    %146 = vmatpush1.msra.mxu0 0.0
    %147 = vmatprep.subr.mxu0 0.0
    %148 = vmatpush1.msra.mxu0 0.0
    %149 = vmatprep.subr.mxu0 0.0
    %150 = vmatpush1.msra.mxu0 0.0
    %151 = vmatprep.mubr.f32.mxu0 0.0
    %152 = vmatmul.mubr.f32.gmra.mrb[0].mxu0 %v62
    %v153 = vpop.f32.mrb[0].mxu0
    %v154 = vadd.f32 %v85, %v153
    %v155 = vpop.f32.mrb[0].mxu0
    %156 = vmatprep.mubr.f32.mxu0 0.0
    %157 = vmatmul.mubr.f32.gmra.mrb[0].mxu0 %v63
    %v158 = vpop.f32.mrb[0].mxu0
    %v159 = vadd.f32 %v85, %v158
    %v160 = vpop.f32.mrb[0].mxu0
    %161 = vdwg.mxu0
    %v162 = vmul.f32 %v154, 0.5
    %v163 = vmul.f32 %v159, 0.5
    %v164 = vmul.f32 %v154, 0.044715
    %v165 = vmul.f32 %v159, 0.044715
    %v166 = vmul.f32 %v164, %v154
    %v167 = vmul.f32 %v165, %v159
    %v168 = vmul.f32 %v166, %v154
    %v169 = vmul.f32 %v167, %v159
    %v170 = vadd.f32 %v154, %v168
    %v171 = vadd.f32 %v159, %v169
    %v172 = vmul.f32 %v170, 0.7978846
    %v173 = vmul.f32 %v171, 0.7978846
    %v174 = vtanh.pop %v172
    %v175 = vtanh.pop %v173
    %v176 = vadd.f32 %v174, 1.0
    %v177 = vadd.f32 %v175, 1.0
    %v178 = vmul.f32 %v162, %v176
    %v179 = vmul.f32 %v163, %v177
    %v180 = vld [vmem:[#allocation8] sm:$0xff]
    %v181 = vld [vmem:[#allocation8 + $0x8] sm:$0xff]
    %v182 = vld [vmem:[#allocation8 + $0x10] sm:$0xff]
    %v183 = vld [vmem:[#allocation8 + $0x18] sm:$0xff]
    %v184 = vld [vmem:[#allocation8 + $0x20] sm:$0xff]
    %v185 = vld [vmem:[#allocation8 + $0x28] sm:$0xff]
    %v186 = vld [vmem:[#allocation8 + $0x30] sm:$0xff]
    %v187 = vld [vmem:[#allocation8 + $0x38] sm:$0xff]
    %v188 = vld [vmem:[#allocation8 + $0x40] sm:$0xff]
    %v189 = vld [vmem:[#allocation8 + $0x48] sm:$0xff]
    %v190 = vld [vmem:[#allocation8 + $0x50] sm:$0xff]
    %v191 = vld [vmem:[#allocation8 + $0x58] sm:$0xff]
    %v192 = vld [vmem:[#allocation8 + $0x60] sm:$0xff]
    %v193 = vld [vmem:[#allocation8 + $0x68] sm:$0xff]
    %v194 = vld [vmem:[#allocation8 + $0x70] sm:$0xff]
    %v195 = vld [vmem:[#allocation8 + $0x78] sm:$0xff]
    %196 = vmatprep.subr.mxu0 0.0
    %197 = vmatpush1.msra.mxu0 %v180
    %198 = vmatprep.subr.mxu0 0.0
    %199 = vmatpush1.msra.mxu0 %v181
    %200 = vmatprep.subr.mxu0 0.0
    %201 = vmatpush1.msra.mxu0 %v182
    %202 = vmatprep.subr.mxu0 0.0
    %203 = vmatpush1.msra.mxu0 %v183
    %204 = vmatprep.subr.mxu0 0.0
    %205 = vmatpush1.msra.mxu0 %v184
    %206 = vmatprep.subr.mxu0 0.0
    %207 = vmatpush1.msra.mxu0 %v185
    %208 = vmatprep.subr.mxu0 0.0
    %209 = vmatpush1.msra.mxu0 %v186
    %210 = vmatprep.subr.mxu0 0.0
    %211 = vmatpush1.msra.mxu0 %v187
    %212 = vmatprep.subr.mxu0 0.0
    %213 = vmatpush1.msra.mxu0 %v188
    %214 = vmatprep.subr.mxu0 0.0
    %215 = vmatpush1.msra.mxu0 %v189
    %216 = vmatprep.subr.mxu0 0.0
    %217 = vmatpush1.msra.mxu0 %v190
    %218 = vmatprep.subr.mxu0 0.0
    %219 = vmatpush1.msra.mxu0 %v191
    %220 = vmatprep.subr.mxu0 0.0
    %221 = vmatpush1.msra.mxu0 %v192
    %222 = vmatprep.subr.mxu0 0.0
    %223 = vmatpush1.msra.mxu0 %v193
    %224 = vmatprep.subr.mxu0 0.0
    %225 = vmatpush1.msra.mxu0 %v194
    %226 = vmatprep.subr.mxu0 0.0
    %227 = vmatpush1.msra.mxu0 %v195
    %228 = vmatprep.subr.mxu0 0.0
    %229 = vmatpush1.msra.mxu0 0.0
    %230 = vmatprep.subr.mxu0 0.0
    %231 = vmatpush1.msra.mxu0 0.0
    %232 = vmatprep.subr.mxu0 0.0
    %233 = vmatpush1.msra.mxu0 0.0
    %234 = vmatprep.subr.mxu0 0.0
    %235 = vmatpush1.msra.mxu0 0.0
    %236 = vmatprep.subr.mxu0 0.0
    %237 = vmatpush1.msra.mxu0 0.0
    %238 = vmatprep.subr.mxu0 0.0
    %239 = vmatpush1.msra.mxu0 0.0
    %240 = vmatprep.subr.mxu0 0.0
    %241 = vmatpush1.msra.mxu0 0.0
    %242 = vmatprep.subr.mxu0 0.0
    %243 = vmatpush1.msra.mxu0 0.0
    %244 = vmatprep.subr.mxu0 0.0
    %245 = vmatpush1.msra.mxu0 0.0
    %246 = vmatprep.subr.mxu0 0.0
    %247 = vmatpush1.msra.mxu0 0.0
    %248 = vmatprep.subr.mxu0 0.0
    %249 = vmatpush1.msra.mxu0 0.0
    %250 = vmatprep.subr.mxu0 0.0
    %251 = vmatpush1.msra.mxu0 0.0
    %252 = vmatprep.subr.mxu0 0.0
    %253 = vmatpush1.msra.mxu0 0.0
    %254 = vmatprep.subr.mxu0 0.0
    %255 = vmatpush1.msra.mxu0 0.0
    %256 = vmatprep.subr.mxu0 0.0
    %257 = vmatpush1.msra.mxu0 0.0
    %258 = vmatprep.subr.mxu0 0.0
    %259 = vmatpush1.msra.mxu0 0.0
    %260 = vmatprep.mubr.f32.mxu0 0.0
    %261 = vmatmul.mubr.f32.gmra.mrb[0].mxu0 %v178
    %v262 = vpop.f32.mrb[0].mxu0
    %v263 = vadd.f32 0.0, %v262
    %v264 = vpop.f32.mrb[0].mxu0
    %265 = vmatprep.mubr.f32.mxu0 0.0
    %266 = vmatmul.mubr.f32.gmra.mrb[0].mxu0 %v179
    %v267 = vpop.f32.mrb[0].mxu0
    %v268 = vadd.f32 0.0, %v267
    %v269 = vpop.f32.mrb[0].mxu0
    %270 = vdwg.mxu0
    %p271 = scmp.eq.s32.totalorder 0, 0
    // Predicated region
    $region34: #{tpu_custom_call.1} parent=1 // pred_check
      %p272 = pneg %p271
    $region35: #{tpu_custom_call.1} parent=1 // pred_check_branch
      %274 = sbr.rel (%p272) target = $region37
    $region36: #{tpu_custom_call.1} parent=1 // pred_region
      %275 = vst [vmem:[#allocation2] sm:$0xff] %v263
      %276 = vst [vmem:[#allocation2 + $0x8] sm:$0xff] %v268
    $region37: #{tpu_custom_call.1} parent=1 // pred_fallthru
      _
    %p277 = scmp.gt.s32.totalorder 0, 0
    // Predicated region
    $region38: #{tpu_custom_call.1} parent=1 // pred_check
      %p278 = pneg %p277
    $region39: #{tpu_custom_call.1} parent=1 // pred_check_branch
      %280 = sbr.rel (%p278) target = $region41
    $region40: #{tpu_custom_call.1} parent=1 // pred_region
      %v281 = vld [vmem:[#allocation2] sm:$0xff]
      %v282 = vld [vmem:[#allocation2 + $0x8] sm:$0xff]
      %v283 = vadd.f32 %v281, %v263
      %v284 = vadd.f32 %v282, %v268
      %285 = vst [vmem:[#allocation2] sm:$0xff] %v283
      %286 = vst [vmem:[#allocation2 + $0x8] sm:$0xff] %v284
    $region41: #{tpu_custom_call.1} parent=1 // pred_fallthru
      _
    // Predicated region
    $region42: #{tpu_custom_call.1} parent=1 // pred_check
      %p287 = pneg %p271
    $region43: #{tpu_custom_call.1} parent=1 // pred_check_branch
      %289 = sbr.rel (%p287) target = $region45
    $region44: #{tpu_custom_call.1} parent=1 // pred_region
      %v290 = vld [vmem:[#allocation2] sm:$0xff]
      %v291 = vld [vmem:[#allocation2 + $0x8] sm:$0xff]
      %v292 = vld [vmem:[%s4] sm:$0x1]
      %v294 = vlaneseq
      %v295 = vshrl.u32 %v294, 7
      %v296 = vsub.s32 0, %v295
      %v297 = vrot.slane %v292, %v296
      %v299 = vadd.f32 %v290, %v297
      %v300 = vadd.f32 %v291, %v297
      %301 = vst [vmem:[#allocation9] sm:$0xff] %v299
      %302 = vst [vmem:[#allocation9 + $0x8] sm:$0xff] %v300
    $region45: #{tpu_custom_call.1} parent=1 // pred_fallthru
      _
    // Predicated region
    $region46: #{tpu_custom_call.1} parent=1 // pred_check
      _
    $region47: #{tpu_custom_call.1} parent=1 // pred_check_branch
      %304 = sbr.rel (0) target = $region49
    $region48: #{tpu_custom_call.1} parent=1 // pred_region
      %s306 = ssub.s32 256, 256
      %307 = vsyncadd [#allocation5], %s306
      %s308 = sshll.u32 [#allocation9], 4
      %s309 = int_to_ptr.vmem [resolvable:$true] %s308
      %314 = dma.vmem_to_hbm [thread:$0]  %s309, 256, %s5, [#allocation5], 128, 128, 8
    $region49: #{tpu_custom_call.1} parent=1 // pred_fallthru
      _
    // Predicated region
    $region50: #{tpu_custom_call.1} parent=1 // pred_check
      _
    $region51: #{tpu_custom_call.1} parent=1 // pred_check_branch
      %316 = sbr.rel (0) target = $region53
    $region52: #{tpu_custom_call.1} parent=1 // pred_region
      %317 = dma.done [#allocation5], 256
    $region53: #{tpu_custom_call.1} parent=1 // pred_fallthru
      _
    %318 = vsyncpa [#allocation4], 1
    %319 = vsyncpa [#allocation7], 1
    %320 = vsyncpa [#allocation5], 1

</llo_original>
